<compile_context>
chip_gen: v7x
topology: tpu7x:2x2x1
jax: 0.10.0
libtpu: 0.0.40
codegen_flags: <defaults>
</compile_context>

<pallas_src>
import functools

import jax
import jax.numpy as jnp
from jax.experimental import pallas as pl
from jax.experimental.pallas import tpu as pltpu


def _round_up(x, m):
    return (x + m - 1) // m * m


def sparse_moe_kernel(x_ref, noise_ref, wr_ref, br_ref,
                      w1_ref, b1_ref, w2_ref, b2_ref,
                      out_ref, *scratch,
                      num_experts, top_k, ep, use_acc_scratch, use_xm):
    si = 0
    if use_acc_scratch:
        acc_ref = scratch[si]; si += 1
    else:
        acc_ref = out_ref          # f32 output: accumulate in the resident output block
    if use_xm:
        xm_ref = scratch[si]; si += 1
    else:
        xm_ref = None
    gates_ref = scratch[si]

    e = pl.program_id(1)

    # ---- Routing: computed once per token tile (expert step 0), cached in VMEM scratch ----
    @pl.when(e == 0)
    def _():
        x = x_ref[...].astype(jnp.float32)                 # (tm, D)
        noise = noise_ref[...].astype(jnp.float32)         # (tm, E)

        # Fused router projection: [logits | noise_logits], each half 128-lane aligned.
        r = jnp.dot(x, wr_ref[...], preferred_element_type=jnp.float32) + br_ref[...]
        logits = r[:, :num_experts]
        noise_logits = r[:, ep:ep + num_experts]           # ep % 128 == 0 -> aligned slice

        # numerically-stable softplus
        sp = jnp.maximum(noise_logits, 0.0) + jnp.log1p(jnp.exp(-jnp.abs(noise_logits)))
        noisy = logits + noise * sp                        # (tm, E)

        # top-k selection (iterative argmax, first-occurrence tie-break like torch.topk)
        lane = jax.lax.broadcasted_iota(jnp.int32, noisy.shape, dimension=1)
        work = noisy
        selected = jnp.zeros(noisy.shape, dtype=jnp.bool_)
        for _ in range(top_k):
            cur_max = jnp.max(work, axis=-1, keepdims=True)
            is_max = work == cur_max
            first_idx = jnp.min(jnp.where(is_max, lane, num_experts), axis=-1,
                                keepdims=True)
            pick = lane == first_idx
            selected = jnp.logical_or(selected, pick)
            work = jnp.where(pick, -jnp.inf, work)

        # sparse softmax: non-selected logits -> -inf -> gate exactly 0
        sparse_logits = jnp.where(selected, noisy, -jnp.inf)
        m = jnp.max(sparse_logits, axis=-1, keepdims=True)
        ez = jnp.exp(sparse_logits - m)
        denom = jnp.sum(ez, axis=-1, keepdims=True)
        inv = pl.reciprocal(denom, approx=True)            # EUP slot
        inv = inv * (2.0 - denom * inv)                    # one Newton step -> ~f32 accuracy
        gates_ref[...] = ez * inv

        if use_xm:
            # Cast x to the MXU operand dtype once per token tile, reused by every expert.
            xm_ref[...] = x_ref[...].astype(xm_ref.dtype)

        acc_ref[...] = jnp.zeros_like(acc_ref)

    # ---- Expert e: Linear -> ReLU -> Linear, weighted by this expert's gate column ----
    xm = xm_ref[...] if use_xm else x_ref[...]
    h = jnp.maximum(
        jnp.dot(xm, w1_ref[...], preferred_element_type=jnp.float32)
        + b1_ref[pl.ds(e, 1), :], 0.0)
    o = (jnp.dot(h.astype(w2_ref.dtype), w2_ref[...], preferred_element_type=jnp.float32)
         + b2_ref[pl.ds(e, 1), :])

    # Gate-column extraction: select + lane reduce runs on VPU/XLU slots which have slack
    # under the (much larger) MXU matmuls above, so it is effectively free filler.
    gates = gates_ref[...]                                 # (tm, E)
    lane = jax.lax.broadcasted_iota(jnp.int32, gates.shape, dimension=1)
    gate_col = jnp.sum(jnp.where(lane == e, gates, 0.0), axis=-1, keepdims=True)
    acc_ref[...] += gate_col * o

    if use_acc_scratch:
        @pl.when(e == num_experts - 1)
        def _():
            out_ref[...] = acc_ref[...].astype(out_ref.dtype)


def sparse_moe(x, noise, params, *, top_k, block_tokens=512, weight_dtype=None,
               weight_buffers=2):
    """x: (B, T, D); noise: (B, T, E) standard-normal draws (randn_like(logits))."""
    B, T, D = x.shape
    N = B * T
    E = params["w_route"].shape[1]
    H = params["w1"].shape[-1]

    # Expert weights in the MXU operand dtype (bf16 valid on v5e/v6e/v7x); router stays f32.
    w1 = params["w1"].astype(weight_dtype) if weight_dtype is not None else params["w1"]
    w2 = params["w2"].astype(weight_dtype) if weight_dtype is not None else params["w2"]
    b1, b2 = params["b1"], params["b2"]                     # resident (E,H)/(E,D) tables
    compute_dtype = w1.dtype
    out_dtype = x.dtype
    use_xm = x.dtype != compute_dtype                       # cast x once per tile if needed
    use_acc_scratch = out_dtype != jnp.float32              # else accumulate in out block

    # Fused, lane-padded router projection: [logits | noise_logits] halves 128-aligned.
    Ep = _round_up(E, 128)
    rdt = params["w_route"].dtype
    w_router = jnp.zeros((D, 2 * Ep), rdt)
    w_router = w_router.at[:, :E].set(params["w_route"])
    w_router = w_router.at[:, Ep:Ep + E].set(params["w_noise"])
    b_router = jnp.zeros((1, 2 * Ep), rdt)
    b_router = b_router.at[:, :E].set(params["b_route"])
    b_router = b_router.at[:, Ep:Ep + E].set(params["b_noise"])

    # ---- token-tile sizing ----
    block_tokens = min(block_tokens, _round_up(N, 8))       # tiny inputs
    if N >= 16:
        # v7x megacore: keep >= 2 token tiles so the "parallel" axis shards over both cores.
        block_tokens = min(block_tokens, _round_up(pl.cdiv(N, 2), 8))
    block_tokens = max(8, _round_up(block_tokens, 8))

    w_bytes = compute_dtype.itemsize
    x_bytes = x.dtype.itemsize
    o_bytes = jnp.dtype(out_dtype).itemsize

    def vmem_est(tm):
        El = _round_up(E, 128)                               # lane padding of E-wide tiles
        Es = _round_up(E, 8)
        b = weight_buffers * (D * H + H * D) * w_bytes       # streamed expert weights
        b += 2 * tm * D * x_bytes                            # x tile (double-buffered)
        b += 2 * tm * El * x_bytes                           # noise tile
        b += 2 * tm * D * o_bytes                            # output tile
        b += 2 * (D + 8) * 2 * Ep * 4                        # fused router weight + bias
        b += 2 * Es * (_round_up(H, 128) + _round_up(D, 128)) * 4   # bias tables
        b += tm * El * 4                                     # gates scratch
        if use_acc_scratch:
            b += tm * D * 4                                  # f32 accumulator
        if use_xm:
            b += tm * D * w_bytes                            # casted-x scratch
        return b

    try:
        vmem_cap = int(pltpu.get_tpu_info().vmem_capacity_bytes)
    except Exception:
        vmem_cap = 64 * 1024 * 1024                          # v7x per-TC (most restrictive)
    while block_tokens > 8 and vmem_est(block_tokens) > int(0.8 * vmem_cap):
        block_tokens = max(8, _round_up(block_tokens // 2, 8))
    vmem_limit = int(min(vmem_cap, max(32 * 1024 * 1024, int(1.5 * vmem_est(block_tokens)))))

    Np = _round_up(N, block_tokens)
    flat_x = x.reshape(N, D)
    flat_noise = noise.reshape(N, E)
    if Np != N:
        flat_x = jnp.pad(flat_x, ((0, Np - N), (0, 0)))
        flat_noise = jnp.pad(flat_noise, ((0, Np - N), (0, 0)))
    n_tiles = Np // block_tokens

    kernel = functools.partial(sparse_moe_kernel, num_experts=E, top_k=top_k, ep=Ep,
                               use_acc_scratch=use_acc_scratch, use_xm=use_xm)

    cost = pl.CostEstimate(
        flops=2 * Np * E * (D * H + H * D) + 2 * Np * D * (2 * Ep),
        transcendentals=5 * Np * E,
        bytes_accessed=(2 * Np * D * x_bytes + Np * E * 4
                        + n_tiles * E * (D * H + H * D) * w_bytes
                        + D * 2 * Ep * 4),
    )

    # Optional deeper expert-weight pipelining (v5e/v6e have VMEM headroom; keep 2 on v7x).
    wspec_kwargs = {}
    if weight_buffers and weight_buffers != 2:
        wspec_kwargs = dict(pipeline_mode=pl.Buffered(weight_buffers))

    scratch_shapes = []
    if use_acc_scratch:
        scratch_shapes.append(pltpu.VMEM((block_tokens, D), jnp.float32))
    if use_xm:
        scratch_shapes.append(pltpu.VMEM((block_tokens, D), compute_dtype))
    scratch_shapes.append(pltpu.VMEM((block_tokens, E), jnp.float32))

    out = pl.pallas_call(
        kernel,
        out_shape=jax.ShapeDtypeStruct((Np, D), out_dtype),
        grid_spec=pltpu.PrefetchScalarGridSpec(
            num_scalar_prefetch=0,
            grid=(n_tiles, E),                                      # experts = reduction axis
            in_specs=[
                pl.BlockSpec((block_tokens, D), lambda i, e: (i, 0)),   # x tile (resident over e)
                pl.BlockSpec((block_tokens, E), lambda i, e: (i, 0)),   # noise tile
                pl.BlockSpec((D, 2 * Ep), lambda i, e: (0, 0)),         # fused router weight
                pl.BlockSpec((1, 2 * Ep), lambda i, e: (0, 0)),         # fused router bias
                pl.BlockSpec((None, D, H), lambda i, e: (e, 0, 0), **wspec_kwargs),  # w1[e]
                pl.BlockSpec((E, H), lambda i, e: (0, 0)),              # full b1 table
                pl.BlockSpec((None, H, D), lambda i, e: (e, 0, 0), **wspec_kwargs),  # w2[e]
                pl.BlockSpec((E, D), lambda i, e: (0, 0)),              # full b2 table
            ],
            out_specs=pl.BlockSpec((block_tokens, D), lambda i, e: (i, 0)),
            scratch_shapes=scratch_shapes,
        ),
        compiler_params=pltpu.CompilerParams(
            dimension_semantics=("parallel", "arbitrary"),
            vmem_limit_bytes=vmem_limit,
        ),
        cost_estimate=cost,
    )(flat_x, flat_noise, w_router, b_router, w1, b1, w2, b2)

    return out[:N].reshape(B, T, D)


def reference(flat_x, flat_noise, p, top_k):
    """Pure-JAX reference mirroring the PyTorch forward (no capacity overflow)."""
    E = p["w_route"].shape[1]
    logits = flat_x @ p["w_route"] + p["b_route"][0]
    noise_logits = flat_x @ p["w_noise"] + p["b_noise"][0]
    noisy = logits + flat_noise * jax.nn.softplus(noise_logits)
    _, topi = jax.lax.top_k(noisy, top_k)
    sel = jnp.any(jax.nn.one_hot(topi, E, dtype=jnp.bool_), axis=-2)
    sparse_logits = jnp.where(sel, noisy, -jnp.inf)
    gates = jax.nn.softmax(sparse_logits, axis=-1)
    out = jnp.zeros_like(flat_x)
    for i in range(E):
        h = jax.nn.relu(flat_x @ p["w1"][i] + p["b1"][i])
        o = h @ p["w2"][i] + p["b2"][i]
        out = out + gates[:, i:i + 1] * o
    return out


if __name__ == "__main__":
    B, T, D, E, K = 2, 16, 32, 4, 2     # batch, seq, n_embed, num_experts, top_k
    H = 4 * D

    key = jax.random.PRNGKey(0)
    keys = jax.random.split(key, 10)

    def unif(k, shape, fan_in):
        bound = 1.0 / jnp.sqrt(jnp.float32(fan_in))
        return jax.random.uniform(k, shape, jnp.float32, -bound, bound)

    params = {
        "w_route": unif(keys[0], (D, E), D),
        "b_route": unif(keys[1], (1, E), D),
        "w_noise": unif(keys[2], (D, E), D),
        "b_noise": unif(keys[3], (1, E), D),
        "w1": unif(keys[4], (E, D, H), D),
        "b1": unif(keys[5], (E, H), D),
        "w2": unif(keys[6], (E, H, D), H),
        "b2": unif(keys[7], (E, D), H),
    }

    x = jax.random.normal(keys[8], (B, T, D), jnp.float32)
    noise = jax.random.normal(keys[9], (B, T, E), jnp.float32)  # randn_like(logits)

    ref = reference(x.reshape(-1, D), noise.reshape(-1, E), params, K).reshape(B, T, D)

    # 1) f32 path: >=2 token tiles (megacore clamp), accumulation in resident output block.
    out = sparse_moe(x, noise, params, top_k=K)
    jax.block_until_ready(out)
    err = float(jnp.max(jnp.abs(out - ref)))
    assert jnp.allclose(out, ref, rtol=1e-4, atol=1e-4), f"f32 max abs err {err}"

    # 2) bf16 expert weights (valid on v5e/v6e/v7x), f32 router math; looser tolerance.
    out_bf = sparse_moe(x, noise, params, top_k=K, weight_dtype=jnp.bfloat16)
    jax.block_until_ready(out_bf)
    err_bf = float(jnp.max(jnp.abs(out_bf.astype(jnp.float32) - ref)))
    assert err_bf < 1e-1, f"bf16-weight max abs err {err_bf}"

    # 3) bf16 activations + weights: exercises the f32-accumulator-scratch + casted-x paths.
    x_bf = x.astype(jnp.bfloat16)
    ref_bf = reference(x_bf.astype(jnp.float32).reshape(-1, D), noise.reshape(-1, E),
                       params, K).reshape(B, T, D)
    out_bf2 = sparse_moe(x_bf, noise, params, top_k=K, weight_dtype=jnp.bfloat16,
                         block_tokens=8)
    jax.block_until_ready(out_bf2)
    err_bf2 = float(jnp.max(jnp.abs(out_bf2.astype(jnp.float32) - ref_bf)))
    assert err_bf2 < 1e-1, f"bf16-activation max abs err {err_bf2}"

    print("KERNEL_OK")
</pallas_src>

<mosaic_0001>
module attributes {stable_mosaic.version = 11 : i64} {
  func.func @sparse_moe_kernel(%arg0: i32, %arg1: i32, %arg2: memref<16x32xf32, #tpu.memory_space<vmem>>, %arg3: memref<16x4xf32, #tpu.memory_space<vmem>>, %arg4: memref<32x256xf32, #tpu.memory_space<vmem>>, %arg5: memref<1x256xf32, #tpu.memory_space<vmem>>, %arg6: memref<1x32x128xf32, #tpu.memory_space<vmem>>, %arg7: memref<4x128xf32, #tpu.memory_space<vmem>>, %arg8: memref<1x128x32xf32, #tpu.memory_space<vmem>>, %arg9: memref<4x32xf32, #tpu.memory_space<vmem>>, %arg10: memref<16x32xf32, #tpu.memory_space<vmem>>, %arg11: memref<16x4xf32, #tpu.memory_space<vmem>>) attributes {dimension_semantics = [#tpu.dimension_semantics<parallel>, #tpu.dimension_semantics<arbitrary>], iteration_bounds = array<i64: 2, 4>, scalar_prefetch = 0 : i64, scratch_operands = 1 : i64, tpu.core_type = #tpu.core_type<tc>, window_params = [{transform_indices = @transform_0, window_bounds = array<i64: 16, 32>}, {transform_indices = @transform_1, window_bounds = array<i64: 16, 4>}, {pipeline_mode = #tpu.pipeline_mode<synchronous>, transform_indices = @transform_2, window_bounds = array<i64: 32, 256>}, {pipeline_mode = #tpu.pipeline_mode<synchronous>, transform_indices = @transform_3, window_bounds = array<i64: 1, 256>}, {transform_indices = @transform_4, window_bounds = array<i64: 1, 32, 128>}, {pipeline_mode = #tpu.pipeline_mode<synchronous>, transform_indices = @transform_5, window_bounds = array<i64: 4, 128>}, {transform_indices = @transform_6, window_bounds = array<i64: 1, 128, 32>}, {pipeline_mode = #tpu.pipeline_mode<synchronous>, transform_indices = @transform_7, window_bounds = array<i64: 4, 32>}, {transform_indices = @transform_8, window_bounds = array<i64: 16, 32>}]} {
    %c0_i32 = arith.constant 0 : i32
    %0 = arith.cmpi eq, %arg1, %c0_i32 : i32
    %1 = arith.extui %0 : i1 to i32
    %c0_i32_0 = arith.constant 0 : i32
    %2 = arith.cmpi ne, %1, %c0_i32_0 : i32
    scf.if %2 {
      %c0_20 = arith.constant 0 : index
      %c0_21 = arith.constant 0 : index
      %33 = vector.load %arg2[%c0_20, %c0_21] : memref<16x32xf32, #tpu.memory_space<vmem>>, vector<16x32xf32>
      %c0_22 = arith.constant 0 : index
      %c0_23 = arith.constant 0 : index
      %34 = vector.load %arg3[%c0_22, %c0_23] : memref<16x4xf32, #tpu.memory_space<vmem>>, vector<16x4xf32>
      %c0_24 = arith.constant 0 : index
      %c0_25 = arith.constant 0 : index
      %35 = vector.load %arg4[%c0_24, %c0_25] : memref<32x256xf32, #tpu.memory_space<vmem>>, vector<32x256xf32>
      %cst_26 = arith.constant dense<0.000000e+00> : vector<16x256xf32>
      %36 = tpu.matmul %33, %35, %cst_26 {dimension_numbers = #tpu.dot_dimension_numbers<[1], [0], [0], [1], [0, 0, 1, 1], [], []>} : vector<16x32xf32>, vector<32x256xf32>, vector<16x256xf32> -> vector<16x256xf32>
      %c0_27 = arith.constant 0 : index
      %c0_28 = arith.constant 0 : index
      %37 = vector.load %arg5[%c0_27, %c0_28] : memref<1x256xf32, #tpu.memory_space<vmem>>, vector<1x256xf32>
      %38 = vector.broadcast %37 : vector<1x256xf32> to vector<16x256xf32>
      %39 = arith.addf %36, %38 : vector<16x256xf32>
      %40 = vector.extract_strided_slice %39 {offsets = [0, 0], sizes = [16, 4], strides = [1, 1]} : vector<16x256xf32> to vector<16x4xf32>
      %41 = vector.extract_strided_slice %39 {offsets = [0, 128], sizes = [16, 4], strides = [1, 1]} : vector<16x256xf32> to vector<16x4xf32>
      %cst_29 = arith.constant 0.000000e+00 : f32
      %42 = vector.broadcast %cst_29 : f32 to vector<16x4xf32>
      %43 = arith.maximumf %41, %42 : vector<16x4xf32>
      %44 = math.absf %41 : vector<16x4xf32>
      %cst_30 = arith.constant 0.000000e+00 : f32
      %45 = vector.broadcast %cst_30 : f32 to vector<16x4xf32>
      %46 = arith.subf %45, %44 : vector<16x4xf32>
      %47 = math.exp %46 : vector<16x4xf32>
      %48 = math.log1p %47 : vector<16x4xf32>
      %49 = arith.addf %43, %48 : vector<16x4xf32>
      %50 = arith.mulf %34, %49 : vector<16x4xf32>
      %51 = arith.addf %40, %50 : vector<16x4xf32>
      %52 = tpu.iota {dimensions = array<i32: 1>} : vector<16x4xi32>
      %false = arith.constant false
      %53 = vector.broadcast %false : i1 to vector<16x4xi1>
      %cst_31 = arith.constant dense<0xFF800000> : vector<16xf32>
      %54 = vector.multi_reduction <maximumf>, %51, %cst_31 [1] : vector<16x4xf32> to vector<16xf32>
      %55 = vector.shape_cast %54 : vector<16xf32> to vector<16x1xf32>
      %56 = vector.broadcast %55 : vector<16x1xf32> to vector<16x4xf32>
      %57 = arith.cmpf oeq, %51, %56 : vector<16x4xf32>
      %c4_i32 = arith.constant 4 : i32
      %58 = vector.broadcast %c4_i32 : i32 to vector<16x4xi32>
      %59 = arith.select %57, %52, %58 : vector<16x4xi1>, vector<16x4xi32>
      %cst_32 = arith.constant dense<2147483647> : vector<16xi32>
      %60 = vector.multi_reduction <minsi>, %59, %cst_32 [1] : vector<16x4xi32> to vector<16xi32>
      %61 = vector.shape_cast %60 : vector<16xi32> to vector<16x1xi32>
      %62 = vector.broadcast %61 : vector<16x1xi32> to vector<16x4xi32>
      %63 = arith.cmpi eq, %52, %62 : vector<16x4xi32>
      %64 = arith.ori %53, %63 : vector<16x4xi1>
      %cst_33 = arith.constant 0xFF800000 : f32
      %65 = vector.broadcast %cst_33 : f32 to vector<16x4xf32>
      %66 = arith.select %63, %65, %51 : vector<16x4xi1>, vector<16x4xf32>
      %cst_34 = arith.constant dense<0xFF800000> : vector<16xf32>
      %67 = vector.multi_reduction <maximumf>, %66, %cst_34 [1] : vector<16x4xf32> to vector<16xf32>
      %68 = vector.shape_cast %67 : vector<16xf32> to vector<16x1xf32>
      %69 = vector.broadcast %68 : vector<16x1xf32> to vector<16x4xf32>
      %70 = arith.cmpf oeq, %66, %69 : vector<16x4xf32>
      %c4_i32_35 = arith.constant 4 : i32
      %71 = vector.broadcast %c4_i32_35 : i32 to vector<16x4xi32>
      %72 = arith.select %70, %52, %71 : vector<16x4xi1>, vector<16x4xi32>
      %cst_36 = arith.constant dense<2147483647> : vector<16xi32>
      %73 = vector.multi_reduction <minsi>, %72, %cst_36 [1] : vector<16x4xi32> to vector<16xi32>
      %74 = vector.shape_cast %73 : vector<16xi32> to vector<16x1xi32>
      %75 = vector.broadcast %74 : vector<16x1xi32> to vector<16x4xi32>
      %76 = arith.cmpi eq, %52, %75 : vector<16x4xi32>
      %77 = arith.ori %64, %76 : vector<16x4xi1>
      %cst_37 = arith.constant 0xFF800000 : f32
      %78 = vector.broadcast %cst_37 : f32 to vector<16x4xf32>
      %79 = arith.select %77, %51, %78 : vector<16x4xi1>, vector<16x4xf32>
      %cst_38 = arith.constant dense<0xFF800000> : vector<16xf32>
      %80 = vector.multi_reduction <maximumf>, %79, %cst_38 [1] : vector<16x4xf32> to vector<16xf32>
      %81 = vector.shape_cast %80 : vector<16xf32> to vector<16x1xf32>
      %82 = vector.broadcast %81 : vector<16x1xf32> to vector<16x4xf32>
      %83 = arith.subf %79, %82 : vector<16x4xf32>
      %84 = math.exp %83 : vector<16x4xf32>
      %cst_39 = arith.constant dense<0.000000e+00> : vector<16xf32>
      %85 = vector.multi_reduction <add>, %84, %cst_39 [1] : vector<16x4xf32> to vector<16xf32>
      %86 = vector.shape_cast %85 : vector<16xf32> to vector<16x1xf32>
      %87 = tpu.reciprocal %86 {approx = true} : vector<16x1xf32> -> vector<16x1xf32>
      %88 = arith.mulf %86, %87 : vector<16x1xf32>
      %cst_40 = arith.constant 2.000000e+00 : f32
      %89 = vector.broadcast %cst_40 : f32 to vector<16x1xf32>
      %90 = arith.subf %89, %88 : vector<16x1xf32>
      %91 = arith.mulf %87, %90 : vector<16x1xf32>
      %92 = vector.broadcast %91 : vector<16x1xf32> to vector<16x4xf32>
      %93 = arith.mulf %84, %92 : vector<16x4xf32>
      %c0_41 = arith.constant 0 : index
      %c0_42 = arith.constant 0 : index
      %94 = vector.load %arg11[%c0_41, %c0_42] : memref<16x4xf32, #tpu.memory_space<vmem>>, vector<16x4xf32>
      tpu.vector_store %arg11[%c0_41, %c0_42], %93 {strides = array<i32>} : memref<16x4xf32, #tpu.memory_space<vmem>>, vector<16x4xf32>,
      %cst_43 = arith.constant 0.000000e+00 : f32
      %95 = vector.broadcast %cst_43 : f32 to vector<16x32xf32>
      %c0_44 = arith.constant 0 : index
      %c0_45 = arith.constant 0 : index
      %96 = vector.load %arg10[%c0_44, %c0_45] : memref<16x32xf32, #tpu.memory_space<vmem>>, vector<16x32xf32>
      tpu.vector_store %arg10[%c0_44, %c0_45], %95 {strides = array<i32>} : memref<16x32xf32, #tpu.memory_space<vmem>>, vector<16x32xf32>,
    } else {
    }
    %c0 = arith.constant 0 : index
    %c0_1 = arith.constant 0 : index
    %3 = vector.load %arg2[%c0, %c0_1] : memref<16x32xf32, #tpu.memory_space<vmem>>, vector<16x32xf32>
    %c0_2 = arith.constant 0 : index
    %c0_3 = arith.constant 0 : index
    %c0_4 = arith.constant 0 : index
    %4 = vector.load %arg6[%c0_2, %c0_3, %c0_4] : memref<1x32x128xf32, #tpu.memory_space<vmem>>, vector<1x32x128xf32>
    %5 = vector.shape_cast %4 : vector<1x32x128xf32> to vector<32x128xf32>
    %cst = arith.constant dense<0.000000e+00> : vector<16x128xf32>
    %6 = tpu.matmul %3, %5, %cst {dimension_numbers = #tpu.dot_dimension_numbers<[1], [0], [0], [1], [0, 0, 1, 1], [], []>} : vector<16x32xf32>, vector<32x128xf32>, vector<16x128xf32> -> vector<16x128xf32>
    %7 = arith.index_cast %arg1 : i32 to index
    %c0_5 = arith.constant 0 : index
    %8 = vector.load %arg7[%7, %c0_5] : memref<4x128xf32, #tpu.memory_space<vmem>>, vector<1x128xf32>
    %9 = vector.broadcast %8 : vector<1x128xf32> to vector<16x128xf32>
    %10 = arith.addf %6, %9 : vector<16x128xf32>
    %cst_6 = arith.constant 0.000000e+00 : f32
    %11 = vector.broadcast %cst_6 : f32 to vector<16x128xf32>
    %12 = arith.maximumf %10, %11 : vector<16x128xf32>
    %c0_7 = arith.constant 0 : index
    %c0_8 = arith.constant 0 : index
    %c0_9 = arith.constant 0 : index
    %13 = vector.load %arg8[%c0_7, %c0_8, %c0_9] : memref<1x128x32xf32, #tpu.memory_space<vmem>>, vector<1x128x32xf32>
    %14 = vector.shape_cast %13 : vector<1x128x32xf32> to vector<128x32xf32>
    %cst_10 = arith.constant dense<0.000000e+00> : vector<16x32xf32>
    %15 = tpu.matmul %12, %14, %cst_10 {dimension_numbers = #tpu.dot_dimension_numbers<[1], [0], [0], [1], [0, 0, 1, 1], [], []>} : vector<16x128xf32>, vector<128x32xf32>, vector<16x32xf32> -> vector<16x32xf32>
    %16 = arith.index_cast %arg1 : i32 to index
    %c0_11 = arith.constant 0 : index
    %17 = vector.load %arg9[%16, %c0_11] : memref<4x32xf32, #tpu.memory_space<vmem>>, vector<1x32xf32>
    %18 = vector.broadcast %17 : vector<1x32xf32> to vector<16x32xf32>
    %19 = arith.addf %15, %18 : vector<16x32xf32>
    %c0_12 = arith.constant 0 : index
    %c0_13 = arith.constant 0 : index
    %20 = vector.load %arg11[%c0_12, %c0_13] : memref<16x4xf32, #tpu.memory_space<vmem>>, vector<16x4xf32>
    %21 = tpu.iota {dimensions = array<i32: 1>} : vector<16x4xi32>
    %22 = vector.broadcast %arg1 : i32 to vector<16x4xi32>
    %23 = arith.cmpi eq, %21, %22 : vector<16x4xi32>
    %cst_14 = arith.constant 0.000000e+00 : f32
    %24 = vector.broadcast %cst_14 : f32 to vector<16x4xf32>
    %25 = arith.select %23, %20, %24 : vector<16x4xi1>, vector<16x4xf32>
    %cst_15 = arith.constant dense<0.000000e+00> : vector<16xf32>
    %26 = vector.multi_reduction <add>, %25, %cst_15 [1] : vector<16x4xf32> to vector<16xf32>
    %27 = vector.shape_cast %26 : vector<16xf32> to vector<16x1xf32>
    %c0_16 = arith.constant 0 : index
    %c0_17 = arith.constant 0 : index
    %28 = vector.load %arg10[%c0_16, %c0_17] : memref<16x32xf32, #tpu.memory_space<vmem>>, vector<16x32xf32>
    %29 = vector.broadcast %27 : vector<16x1xf32> to vector<16x32xf32>
    %30 = arith.mulf %29, %19 : vector<16x32xf32>
    %31 = arith.addf %28, %30 : vector<16x32xf32>
    %c0_18 = arith.constant 0 : index
    %c0_19 = arith.constant 0 : index
    %32 = vector.load %arg10[%c0_18, %c0_19] : memref<16x32xf32, #tpu.memory_space<vmem>>, vector<16x32xf32>
    tpu.vector_store %arg10[%c0_18, %c0_19], %31 {strides = array<i32>} : memref<16x32xf32, #tpu.memory_space<vmem>>, vector<16x32xf32>,
    return
  }
  func.func @transform_0(%arg0: i32, %arg1: i32) -> (i32, i32) {
    %c0_i32 = arith.constant 0 : i32
    %c0_i32_0 = arith.constant 0 : i32
    return %arg0, %c0_i32 : i32, i32
  }
  func.func @transform_1(%arg0: i32, %arg1: i32) -> (i32, i32) {
    %c0_i32 = arith.constant 0 : i32
    %c0_i32_0 = arith.constant 0 : i32
    return %arg0, %c0_i32 : i32, i32
  }
  func.func @transform_2(%arg0: i32, %arg1: i32) -> (i32, i32) {
    %c0_i32 = arith.constant 0 : i32
    %c0_i32_0 = arith.constant 0 : i32
    %c0_i32_1 = arith.constant 0 : i32
    return %c0_i32, %c0_i32_0 : i32, i32
  }
  func.func @transform_3(%arg0: i32, %arg1: i32) -> (i32, i32) {
    %c0_i32 = arith.constant 0 : i32
    %c0_i32_0 = arith.constant 0 : i32
    %c0_i32_1 = arith.constant 0 : i32
    return %c0_i32, %c0_i32_0 : i32, i32
  }
  func.func @transform_4(%arg0: i32, %arg1: i32) -> (i32, i32, i32) {
    %c0_i32 = arith.constant 0 : i32
    %c0_i32_0 = arith.constant 0 : i32
    %c0_i32_1 = arith.constant 0 : i32
    return %arg1, %c0_i32, %c0_i32_0 : i32, i32, i32
  }
  func.func @transform_5(%arg0: i32, %arg1: i32) -> (i32, i32) {
    %c0_i32 = arith.constant 0 : i32
    %c0_i32_0 = arith.constant 0 : i32
    %c0_i32_1 = arith.constant 0 : i32
    return %c0_i32, %c0_i32_0 : i32, i32
  }
  func.func @transform_6(%arg0: i32, %arg1: i32) -> (i32, i32, i32) {
    %c0_i32 = arith.constant 0 : i32
    %c0_i32_0 = arith.constant 0 : i32
    %c0_i32_1 = arith.constant 0 : i32
    return %arg1, %c0_i32, %c0_i32_0 : i32, i32, i32
  }
  func.func @transform_7(%arg0: i32, %arg1: i32) -> (i32, i32) {
    %c0_i32 = arith.constant 0 : i32
    %c0_i32_0 = arith.constant 0 : i32
    %c0_i32_1 = arith.constant 0 : i32
    return %c0_i32, %c0_i32_0 : i32, i32
  }
  func.func @transform_8(%arg0: i32, %arg1: i32) -> (i32, i32) {
    %c0_i32 = arith.constant 0 : i32
    %c0_i32_0 = arith.constant 0 : i32
    return %arg0, %c0_i32 : i32, i32
  }
}

</mosaic_0001>

<llo_original>
// kernel: tpu_custom_call.1
$region0: #{tpu_custom_call.1}
  #allocation0 [shape = 'u32[]', space=smem, size = 0x4, offset = 0x4, fixed_abs, tag = 'smem constant byte address 0x4 - core index']
  #allocation1 [shape = 'u32[144,128]{1,0:T(1,128)}', space=vmem, size = 0x12000, scoped, tag = 'internal scratch']
  #allocation2 [shape = 'f32[16,4]{1,0:T(8,128)}', space=vmem, size = 0x2000, scoped, tag = 'scratch operand']
  %s0 = inlined_call_operand.vmem [shape: f32[32,32], index: 0, kind: input, shape index: {}]
  %s1 = inlined_call_operand.vmem [shape: f32[32,4], index: 1, kind: input, shape index: {}]
  %s2 = inlined_call_operand.vmem [shape: f32[32,256], index: 2, kind: input, shape index: {}]
  %s3 = inlined_call_operand.vmem [shape: f32[1,256], index: 3, kind: input, shape index: {}]
  %s4 = inlined_call_operand.vmem [shape: f32[4,32,128], index: 4, kind: input, shape index: {}]
  %s5 = inlined_call_operand.vmem [shape: f32[4,128], index: 5, kind: input, shape index: {}]
  %s6 = inlined_call_operand.vmem [shape: f32[4,128,32], index: 6, kind: input, shape index: {}]
  %s7 = inlined_call_operand.vmem [shape: f32[4,32], index: 7, kind: input, shape index: {}]
  %s8 = inlined_call_operand.hbm [shape: f32[32,32], index: 8, kind: output, shape index: {}]
  %s9 = sld [smem:[#allocation0]]
  $region69: #{tpu_custom_call.1} parent=0
    _
  %s11 = ssub.s32 1, %s9
  %s12 = scalar_select 0, %s11, %s9
  $region1: #{tpu_custom_call.1} parent=0
    #allocation3 [shape = 'u8[16384]{0}', space=vmem, size = 0x4000, scoped, tag = 'output window, operand 0']
    #allocation4 [shape = 's32[2]{0}', space=sflag, size = 0x8, scoped, tag = 'scoped memory for tpu_custom_call.1']
    %13 = vsyncpa [#allocation4], 0
    %s14 = scalar_lea.sflag [#allocation4], 1
    %15 = vsyncpa %s14, 0
    loop: start=0, step=1, limit=10
    $region2: #{tpu_custom_call.1} parent=1 // loop_pre_header
      _
    $region3: #{tpu_custom_call.1} parent=1 // loop_header
      %s17 = sphi 0, %s21
      %p18 = scmp.ge.s32.totalorder %s17, 10
      %s24 = sphi 0, %s36
      %s25 = sphi 0, %s32
      %s26 = sphi 0, %s24
      %s27 = sphi 0, %s25
      %s28 = sphi 0, %s26
      %s29 = sphi 0, %s27
      %s39 = sphi 0, %s41
      %s42 = sphi 0, %s39
      %s43 = sphi 0, %s42
      %s59 = sphi 0, %s43
      %s65 = sphi 0, %s67
      %s68 = sphi 0, %s65
      %s69 = sphi 0, %s68
      %s85 = sphi 0, %s69
      %s89 = sphi 0, %s89
      %s91 = sphi 0, %s89
      %s92 = sphi 0, %s91
      %s106 = sphi 0, %s92
      %s110 = sphi 0, %s110
      %s112 = sphi 0, %s110
      %s113 = sphi 0, %s112
      %s127 = sphi 0, %s113
      %s133 = sphi 0, %s135
      %s136 = sphi 0, %s133
      %s137 = sphi 0, %s136
      %s153 = sphi 0, %s137
      %s157 = sphi 0, %s157
      %s159 = sphi 0, %s157
      %s160 = sphi 0, %s159
      %s174 = sphi 0, %s160
      %s180 = sphi 0, %s182
      %s183 = sphi 0, %s180
      %s184 = sphi 0, %s183
      %s200 = sphi 0, %s184
      %s204 = sphi 0, %s204
      %s206 = sphi 0, %s204
      %s207 = sphi 0, %s206
      %s221 = sphi 0, %s207
      %s227 = sphi 0, %s229
      %s230 = sphi 0, %s227
      %s231 = sphi 0, %s230
      %s247 = sphi 0, %s231
    $region4: #{tpu_custom_call.1} parent=1 // loop_header_branch
      %20 = sbr.rel (%p18) target = $region8
    $region5: #{tpu_custom_call.1} parent=1 // loop_body
      %s22 = ssub.s32 %s17, 1
      %s23 = ssub.s32 %s17, 2
      %s30 = sadd.s32 1, %s25
      %p31 = scmp.ge.s32.totalorder %s30, 4
      %s32 = scalar_select %p31, 0, %s30
      %s33 = sadd.s32 1, %s24
      %s34 = scalar_select %p31, %s33, %s24
      %p35 = scmp.ge.s32.totalorder %s34, 2
      %s36 = scalar_select %p35, 0, %s34
      %s37 = ssub.s32 %s24, %s36
      %p38 = scmp.eq.s32.totalorder %s37, 0
      %s40 = sadd.s32 %s39, 1
      %s41 = scalar_select %p38, %s39, %s40
      %p44 = pneg %p38
      %p45 = scmp.eq.s32.totalorder %s17, 7
      %p46 = por %p44, %p45
      %p47 = scmp.ne.s32.totalorder %s39, %s42
      %p48 = scmp.eq.s32.totalorder %s17, 0
      %p49 = por %p47, %p48
      %p50 = scmp.ne.s32.totalorder %s39, %s42
      %p51 = scmp.eq.s32.totalorder %s22, 7
      %p52 = por %p50, %p51
      %p53 = scmp.ne.s32.totalorder %s42, %s43
      %p54 = scmp.eq.s32.totalorder %s22, 0
      %p55 = por %p53, %p54
      %p56 = scmp.ne.s32.totalorder %s42, %s43
      %p57 = scmp.eq.s32.totalorder %s23, 7
      %p58 = por %p56, %p57
      %p60 = scmp.ne.s32.totalorder %s43, %s59
      %p61 = scmp.eq.s32.totalorder %s23, 0
      %p62 = por %p60, %p61
      %s63 = ssub.s32 %s24, %s36
      %p64 = scmp.eq.s32.totalorder %s63, 0
      %s66 = sadd.s32 %s65, 1
      %s67 = scalar_select %p64, %s65, %s66
      %p70 = pneg %p64
      %p71 = scmp.eq.s32.totalorder %s17, 7
      %p72 = por %p70, %p71
      %p73 = scmp.ne.s32.totalorder %s65, %s68
      %p74 = scmp.eq.s32.totalorder %s17, 0
      %p75 = por %p73, %p74
      %p76 = scmp.ne.s32.totalorder %s65, %s68
      %p77 = scmp.eq.s32.totalorder %s22, 7
      %p78 = por %p76, %p77
      %p79 = scmp.ne.s32.totalorder %s68, %s69
      %p80 = scmp.eq.s32.totalorder %s22, 0
      %p81 = por %p79, %p80
      %p82 = scmp.ne.s32.totalorder %s68, %s69
      %p83 = scmp.eq.s32.totalorder %s23, 7
      %p84 = por %p82, %p83
      %p86 = scmp.ne.s32.totalorder %s69, %s85
      %p87 = scmp.eq.s32.totalorder %s23, 0
      %p88 = por %p86, %p87
      %s90 = sadd.s32 %s89, 1
      %p93 = scmp.eq.s32.totalorder %s17, 7
      %p94 = scmp.ne.s32.totalorder %s89, %s91
      %p95 = scmp.eq.s32.totalorder %s17, 0
      %p96 = por %p94, %p95
      %p97 = scmp.ne.s32.totalorder %s89, %s91
      %p98 = scmp.eq.s32.totalorder %s22, 7
      %p99 = por %p97, %p98
      %p100 = scmp.ne.s32.totalorder %s91, %s92
      %p101 = scmp.eq.s32.totalorder %s22, 0
      %p102 = por %p100, %p101
      %p103 = scmp.ne.s32.totalorder %s91, %s92
      %p104 = scmp.eq.s32.totalorder %s23, 7
      %p105 = por %p103, %p104
      %p107 = scmp.ne.s32.totalorder %s92, %s106
      %p108 = scmp.eq.s32.totalorder %s23, 0
      %p109 = por %p107, %p108
      %s111 = sadd.s32 %s110, 1
      %p114 = scmp.eq.s32.totalorder %s17, 7
      %p115 = scmp.ne.s32.totalorder %s110, %s112
      %p116 = scmp.eq.s32.totalorder %s17, 0
      %p117 = por %p115, %p116
      %p118 = scmp.ne.s32.totalorder %s110, %s112
      %p119 = scmp.eq.s32.totalorder %s22, 7
      %p120 = por %p118, %p119
      %p121 = scmp.ne.s32.totalorder %s112, %s113
      %p122 = scmp.eq.s32.totalorder %s22, 0
      %p123 = por %p121, %p122
      %p124 = scmp.ne.s32.totalorder %s112, %s113
      %p125 = scmp.eq.s32.totalorder %s23, 7
      %p126 = por %p124, %p125
      %p128 = scmp.ne.s32.totalorder %s113, %s127
      %p129 = scmp.eq.s32.totalorder %s23, 0
      %p130 = por %p128, %p129
      %s131 = ssub.s32 %s25, %s32
      %p132 = scmp.eq.s32.totalorder %s131, 0
      %s134 = sadd.s32 %s133, 1
      %s135 = scalar_select %p132, %s133, %s134
      %p138 = pneg %p132
      %p139 = scmp.eq.s32.totalorder %s17, 7
      %p140 = por %p138, %p139
      %p141 = scmp.ne.s32.totalorder %s133, %s136
      %p142 = scmp.eq.s32.totalorder %s17, 0
      %p143 = por %p141, %p142
      %p144 = scmp.ne.s32.totalorder %s133, %s136
      %p145 = scmp.eq.s32.totalorder %s22, 7
      %p146 = por %p144, %p145
      %p147 = scmp.ne.s32.totalorder %s136, %s137
      %p148 = scmp.eq.s32.totalorder %s22, 0
      %p149 = por %p147, %p148
      %p150 = scmp.ne.s32.totalorder %s136, %s137
      %p151 = scmp.eq.s32.totalorder %s23, 7
      %p152 = por %p150, %p151
      %p154 = scmp.ne.s32.totalorder %s137, %s153
      %p155 = scmp.eq.s32.totalorder %s23, 0
      %p156 = por %p154, %p155
      %s158 = sadd.s32 %s157, 1
      %p161 = scmp.eq.s32.totalorder %s17, 7
      %p162 = scmp.ne.s32.totalorder %s157, %s159
      %p163 = scmp.eq.s32.totalorder %s17, 0
      %p164 = por %p162, %p163
      %p165 = scmp.ne.s32.totalorder %s157, %s159
      %p166 = scmp.eq.s32.totalorder %s22, 7
      %p167 = por %p165, %p166
      %p168 = scmp.ne.s32.totalorder %s159, %s160
      %p169 = scmp.eq.s32.totalorder %s22, 0
      %p170 = por %p168, %p169
      %p171 = scmp.ne.s32.totalorder %s159, %s160
      %p172 = scmp.eq.s32.totalorder %s23, 7
      %p173 = por %p171, %p172
      %p175 = scmp.ne.s32.totalorder %s160, %s174
      %p176 = scmp.eq.s32.totalorder %s23, 0
      %p177 = por %p175, %p176
      %s178 = ssub.s32 %s25, %s32
      %p179 = scmp.eq.s32.totalorder %s178, 0
      %s181 = sadd.s32 %s180, 1
      %s182 = scalar_select %p179, %s180, %s181
      %p185 = pneg %p179
      %p186 = scmp.eq.s32.totalorder %s17, 7
      %p187 = por %p185, %p186
      %p188 = scmp.ne.s32.totalorder %s180, %s183
      %p189 = scmp.eq.s32.totalorder %s17, 0
      %p190 = por %p188, %p189
      %p191 = scmp.ne.s32.totalorder %s180, %s183
      %p192 = scmp.eq.s32.totalorder %s22, 7
      %p193 = por %p191, %p192
      %p194 = scmp.ne.s32.totalorder %s183, %s184
      %p195 = scmp.eq.s32.totalorder %s22, 0
      %p196 = por %p194, %p195
      %p197 = scmp.ne.s32.totalorder %s183, %s184
      %p198 = scmp.eq.s32.totalorder %s23, 7
      %p199 = por %p197, %p198
      %p201 = scmp.ne.s32.totalorder %s184, %s200
      %p202 = scmp.eq.s32.totalorder %s23, 0
      %p203 = por %p201, %p202
      %s205 = sadd.s32 %s204, 1
      %p208 = scmp.eq.s32.totalorder %s17, 7
      %p209 = scmp.ne.s32.totalorder %s204, %s206
      %p210 = scmp.eq.s32.totalorder %s17, 0
      %p211 = por %p209, %p210
      %p212 = scmp.ne.s32.totalorder %s204, %s206
      %p213 = scmp.eq.s32.totalorder %s22, 7
      %p214 = por %p212, %p213
      %p215 = scmp.ne.s32.totalorder %s206, %s207
      %p216 = scmp.eq.s32.totalorder %s22, 0
      %p217 = por %p215, %p216
      %p218 = scmp.ne.s32.totalorder %s206, %s207
      %p219 = scmp.eq.s32.totalorder %s23, 7
      %p220 = por %p218, %p219
      %p222 = scmp.ne.s32.totalorder %s207, %s221
      %p223 = scmp.eq.s32.totalorder %s23, 0
      %p224 = por %p222, %p223
      %s225 = ssub.s32 %s24, %s36
      %p226 = scmp.eq.s32.totalorder %s225, 0
      %s228 = sadd.s32 %s227, 1
      %s229 = scalar_select %p226, %s227, %s228
      %p232 = pneg %p226
      %p233 = scmp.eq.s32.totalorder %s17, 7
      %p234 = por %p232, %p233
      %p235 = scmp.ne.s32.totalorder %s227, %s230
      %p236 = scmp.eq.s32.totalorder %s17, 0
      %p237 = por %p235, %p236
      %p238 = scmp.ne.s32.totalorder %s227, %s230
      %p239 = scmp.eq.s32.totalorder %s22, 7
      %p240 = por %p238, %p239
      %p241 = scmp.ne.s32.totalorder %s230, %s231
      %p242 = scmp.eq.s32.totalorder %s22, 0
      %p243 = por %p241, %p242
      %p244 = scmp.ne.s32.totalorder %s230, %s231
      %p245 = scmp.eq.s32.totalorder %s23, 7
      %p246 = por %p244, %p245
      %p248 = scmp.ne.s32.totalorder %s231, %s247
      %p249 = scmp.eq.s32.totalorder %s23, 0
      %p250 = por %p248, %p249
      %p251 = scmp.le.s32.totalorder 1, %s17
      %p252 = scmp.lt.s32.totalorder %s17, 9
      %p253 = pnand %p251, %p252
      %p254 = pneg %p253
      // Predicated region
      $region9: #{tpu_custom_call.1} parent=5 // pred_check
        _
      $region10: #{tpu_custom_call.1} parent=5 // pred_check_branch
        %256 = sbr.rel (%p253) target = $region12
      $region11: #{tpu_custom_call.1} parent=5 // pred_region
        %s257 = ssub.s32 %s17, 1
        // Predicated region
        $region13: #{tpu_custom_call.1} parent=11 // pred_check
          %p258 = pneg %p102
        $region14: #{tpu_custom_call.1} parent=11 // pred_check_branch
          %260 = sbr.rel (%p258) target = $region16
        $region15: #{tpu_custom_call.1} parent=11 // pred_region
          _
        $region16: #{tpu_custom_call.1} parent=11 // pred_fallthru
          _
        // Predicated region
        $region17: #{tpu_custom_call.1} parent=11 // pred_check
          %p261 = pneg %p123
        $region18: #{tpu_custom_call.1} parent=11 // pred_check_branch
          %263 = sbr.rel (%p261) target = $region20
        $region19: #{tpu_custom_call.1} parent=11 // pred_region
          _
        $region20: #{tpu_custom_call.1} parent=11 // pred_fallthru
          _
        // Predicated region
        $region21: #{tpu_custom_call.1} parent=11 // pred_check
          %p264 = pneg %p170
        $region22: #{tpu_custom_call.1} parent=11 // pred_check_branch
          %266 = sbr.rel (%p264) target = $region24
        $region23: #{tpu_custom_call.1} parent=11 // pred_region
          _
        $region24: #{tpu_custom_call.1} parent=11 // pred_fallthru
          _
        // Predicated region
        $region25: #{tpu_custom_call.1} parent=11 // pred_check
          %p267 = pneg %p217
        $region26: #{tpu_custom_call.1} parent=11 // pred_check_branch
          %269 = sbr.rel (%p267) target = $region28
        $region27: #{tpu_custom_call.1} parent=11 // pred_region
          _
        $region28: #{tpu_custom_call.1} parent=11 // pred_fallthru
          _
      $region12: #{tpu_custom_call.1} parent=5 // pred_fallthru
        _
      %p270 = scmp.lt.s32.totalorder %s17, 8
      // Predicated region
      $region29: #{tpu_custom_call.1} parent=5 // pred_check
        %p271 = pneg %p270
      $region30: #{tpu_custom_call.1} parent=5 // pred_check_branch
        %273 = sbr.rel (%p271) target = $region32
      $region31: #{tpu_custom_call.1} parent=5 // pred_region
        // Predicated region
        $region33: #{tpu_custom_call.1} parent=31 // pred_check
          %p274 = pneg %p49
        $region34: #{tpu_custom_call.1} parent=31 // pred_check_branch
          %276 = sbr.rel (%p274) target = $region36
        $region35: #{tpu_custom_call.1} parent=31 // pred_region
          %s277 = smul.u32 2, %s24
          %p278 = scmp.lt.s32.totalorder %s277, 3
          %s279 = scalar_select %p278, %s277, 3
          %s280 = smul.addr %s279, 8
          %s281 = scalar_lea.vmem %s0, %s280
          %s282 = smul.u32 2, %s24
        $region36: #{tpu_custom_call.1} parent=31 // pred_fallthru
          _
        // Predicated region
        $region37: #{tpu_custom_call.1} parent=31 // pred_check
          %p283 = pneg %p75
        $region38: #{tpu_custom_call.1} parent=31 // pred_check_branch
          %285 = sbr.rel (%p283) target = $region40
        $region39: #{tpu_custom_call.1} parent=31 // pred_region
          %s286 = smul.u32 2, %s24
          %p287 = scmp.lt.s32.totalorder %s286, 3
          %s288 = scalar_select %p287, %s286, 3
          %s289 = smul.addr %s288, 8
          %s290 = scalar_lea.vmem %s1, %s289
          %s291 = smul.u32 2, %s24
        $region40: #{tpu_custom_call.1} parent=31 // pred_fallthru
          _
        // Predicated region
        $region41: #{tpu_custom_call.1} parent=31 // pred_check
          %p292 = pneg %p143
        $region42: #{tpu_custom_call.1} parent=31 // pred_check_branch
          %294 = sbr.rel (%p292) target = $region44
        $region43: #{tpu_custom_call.1} parent=31 // pred_region
          %p295 = scmp.lt.s32.totalorder %s25, 3
          %s296 = scalar_select %p295, %s25, 3
          %s297 = smul.addr %s296, 4
          %s298 = smul.addr %s297, 8
          %s299 = scalar_lea.vmem %s4, %s298
        $region44: #{tpu_custom_call.1} parent=31 // pred_fallthru
          _
        // Predicated region
        $region45: #{tpu_custom_call.1} parent=31 // pred_check
          %p300 = pneg %p190
        $region46: #{tpu_custom_call.1} parent=31 // pred_check_branch
          %302 = sbr.rel (%p300) target = $region48
        $region47: #{tpu_custom_call.1} parent=31 // pred_region
          %p303 = scmp.lt.s32.totalorder %s25, 3
          %s304 = scalar_select %p303, %s25, 3
          %s305 = smul.addr %s304, 16
          %s306 = smul.addr %s305, 8
          %s307 = scalar_lea.vmem %s6, %s306
        $region48: #{tpu_custom_call.1} parent=31 // pred_fallthru
          _
      $region32: #{tpu_custom_call.1} parent=5 // pred_fallthru
        _
      %p308 = scmp.le.s32.totalorder 1, %s17
      %p309 = scmp.lt.s32.totalorder %s17, 9
      %p310 = pnand %p308, %p309
      %p311 = pneg %p310
      // Predicated region
      $region49: #{tpu_custom_call.1} parent=5 // pred_check
        _
      $region50: #{tpu_custom_call.1} parent=5 // pred_check_branch
        %313 = sbr.rel (%p310) target = $region52
      $region51: #{tpu_custom_call.1} parent=5 // pred_region
        %s314 = ssub.s32 %s17, 1
        %s315 = smul.u32 2, %s26
        %p316 = scmp.lt.s32.totalorder %s315, 3
        %s317 = scalar_select %p316, %s315, 3
        %s318 = smul.addr %s317, 8
        %s319 = scalar_lea.vmem %s0, %s318
        %p320 = pneg %p55
        %p321 = pneg %p52
        %s322 = smul.u32 2, %s26
        %p323 = scmp.lt.s32.totalorder %s322, 3
        %s324 = scalar_select %p323, %s322, 3
        %s325 = smul.addr %s324, 8
        %s326 = scalar_lea.vmem %s1, %s325
        %p327 = pneg %p81
        %p328 = pneg %p78
        %p329 = pneg %p102
        %p330 = pneg %p99
        %p331 = pneg %p123
        %p332 = pneg %p120
        %p333 = scmp.lt.s32.totalorder %s27, 3
        %s334 = scalar_select %p333, %s27, 3
        %s335 = smul.addr %s334, 4
        %s336 = smul.addr %s335, 8
        %s337 = scalar_lea.vmem %s4, %s336
        %p338 = pneg %p149
        %p339 = pneg %p146
        %p340 = pneg %p170
        %p341 = pneg %p167
        %p342 = scmp.lt.s32.totalorder %s27, 3
        %s343 = scalar_select %p342, %s27, 3
        %s344 = smul.addr %s343, 16
        %s345 = smul.addr %s344, 8
        %s346 = scalar_lea.vmem %s6, %s345
        %p347 = pneg %p196
        %p348 = pneg %p193
        %p349 = pneg %p217
        %p350 = pneg %p214
        %p351 = pneg %p243
        %p352 = pneg %p240
        %s353 = sand.u32 %s230, 1
        %s354 = scalar_lea.sflag [#allocation4], %s353
        %s355 = sand.u32 %s230, 1
        %s356 = smul.addr %s355, 16
        %s357 = scalar_lea.vmem [#allocation3], %s356
        %s358 = smul.u32 2, %s26
        %p359 = scmp.lt.s32.totalorder %s358, 3
        %s360 = scalar_select %p359, %s358, 3
        %s361 = smul.addr %s360, 8
        %s362 = scalar_lea.vmem %s0, %s361
        %s363 = smul.u32 2, %s26
        %s364 = smul.u32 2, %s26
        %p365 = scmp.lt.s32.totalorder %s364, 3
        %s366 = scalar_select %p365, %s364, 3
        %s367 = smul.addr %s366, 8
        %s368 = scalar_lea.vmem %s1, %s367
        %s369 = smul.u32 2, %s26
        %p370 = scmp.lt.s32.totalorder %s27, 3
        %s371 = scalar_select %p370, %s27, 3
        %s372 = smul.addr %s371, 4
        %s373 = smul.addr %s372, 8
        %s374 = scalar_lea.vmem %s4, %s373
        %p375 = scmp.lt.s32.totalorder %s27, 3
        %s376 = scalar_select %p375, %s27, 3
        %s377 = smul.addr %s376, 16
        %s378 = smul.addr %s377, 8
        %s379 = scalar_lea.vmem %s6, %s378
        %s380 = smul.u32 2, %s26
        %p381 = scmp.eq.s32.totalorder %s27, 0
        // Predicated region
        $region53: #{tpu_custom_call.1} parent=51 // pred_check
          %p382 = pneg %p381
        $region54: #{tpu_custom_call.1} parent=51 // pred_check_branch
          %384 = sbr.rel (%p382) target = $region56
        $region55: #{tpu_custom_call.1} parent=51 // pred_region
          %v385 = vld [vmem:[%s362] sm:$0xff]
          %v386 = vld [vmem:[%s362 + $0x8] sm:$0xff]
          %v387 = vld [vmem:[%s368] sm:$0xff]
          %v388 = vld [vmem:[%s368 + $0x8] sm:$0xff]
          %v389 = vld [vmem:[%s2] sm:$0xff]
          %v390 = vld [vmem:[%s2 + $0x8] sm:$0xff]
          %v391 = vld [vmem:[%s2 + $0x10] sm:$0xff]
          %v392 = vld [vmem:[%s2 + $0x18] sm:$0xff]
          %v393 = vld [vmem:[%s2 + $0x20] sm:$0xff]
          %v394 = vld [vmem:[%s2 + $0x28] sm:$0xff]
          %v395 = vld [vmem:[%s2 + $0x30] sm:$0xff]
          %v396 = vld [vmem:[%s2 + $0x38] sm:$0xff]
          %v397 = vld [vmem:[%s3] sm:$0x3]
          %v399 = vlaneseq
          %v400 = vshrl.u32 %v399, 7
          %v401 = vsub.s32 0, %v400
          %v402 = vrot.slane %v397, %v401
          %v403 = vlaneseq
          %v404 = vshrl.u32 %v403, 7
          %v405 = vsub.s32 1, %v404
          %v406 = vrot.slane %v397, %v405
          %vm409 = vcmask 261120
          %v411 = vsel %vm409, %v385, 0
          %v414 = vsel %vm409, %v386, 0
          %416 = vmatprep.subr.mxu0 %v390
          %417 = vmatpush1.msra.mxu0 %v389
          %418 = vmatprep.subr.mxu0 %v392
          %419 = vmatpush1.msra.mxu0 %v391
          %420 = vmatprep.subr.mxu0 %v394
          %421 = vmatpush1.msra.mxu0 %v393
          %422 = vmatprep.subr.mxu0 %v396
          %423 = vmatpush1.msra.mxu0 %v395
          %424 = vmatprep.subr.mxu0 0.0
          %425 = vmatpush1.msra.mxu0 0.0
          %426 = vmatprep.subr.mxu0 0.0
          %427 = vmatpush1.msra.mxu0 0.0
          %428 = vmatprep.subr.mxu0 0.0
          %429 = vmatpush1.msra.mxu0 0.0
          %430 = vmatprep.subr.mxu0 0.0
          %431 = vmatpush1.msra.mxu0 0.0
          %432 = vmatprep.subr.mxu0 0.0
          %433 = vmatpush1.msra.mxu0 0.0
          %434 = vmatprep.subr.mxu0 0.0
          %435 = vmatpush1.msra.mxu0 0.0
          %436 = vmatprep.subr.mxu0 0.0
          %437 = vmatpush1.msra.mxu0 0.0
          %438 = vmatprep.subr.mxu0 0.0
          %439 = vmatpush1.msra.mxu0 0.0
          %440 = vmatprep.subr.mxu0 0.0
          %441 = vmatpush1.msra.mxu0 0.0
          %442 = vmatprep.subr.mxu0 0.0
          %443 = vmatpush1.msra.mxu0 0.0
          %444 = vmatprep.subr.mxu0 0.0
          %445 = vmatpush1.msra.mxu0 0.0
          %446 = vmatprep.subr.mxu0 0.0
          %447 = vmatpush1.msra.mxu0 0.0
          %448 = vmatprep.subr.mxu0 0.0
          %449 = vmatpush1.msra.mxu0 0.0
          %450 = vmatprep.subr.mxu0 0.0
          %451 = vmatpush1.msra.mxu0 0.0
          %452 = vmatprep.subr.mxu0 0.0
          %453 = vmatpush1.msra.mxu0 0.0
          %454 = vmatprep.subr.mxu0 0.0
          %455 = vmatpush1.msra.mxu0 0.0
          %456 = vmatprep.subr.mxu0 0.0
          %457 = vmatpush1.msra.mxu0 0.0
          %458 = vmatprep.subr.mxu0 0.0
          %459 = vmatpush1.msra.mxu0 0.0
          %460 = vmatprep.subr.mxu0 0.0
          %461 = vmatpush1.msra.mxu0 0.0
          %462 = vmatprep.subr.mxu0 0.0
          %463 = vmatpush1.msra.mxu0 0.0
          %464 = vmatprep.subr.mxu0 0.0
          %465 = vmatpush1.msra.mxu0 0.0
          %466 = vmatprep.subr.mxu0 0.0
          %467 = vmatpush1.msra.mxu0 0.0
          %468 = vmatprep.subr.mxu0 0.0
          %469 = vmatpush1.msra.mxu0 0.0
          %470 = vmatprep.subr.mxu0 0.0
          %471 = vmatpush1.msra.mxu0 0.0
          %472 = vmatprep.subr.mxu0 0.0
          %473 = vmatpush1.msra.mxu0 0.0
          %474 = vmatprep.subr.mxu0 0.0
          %475 = vmatpush1.msra.mxu0 0.0
          %476 = vmatprep.subr.mxu0 0.0
          %477 = vmatpush1.msra.mxu0 0.0
          %478 = vmatprep.subr.mxu0 0.0
          %479 = vmatpush1.msra.mxu0 0.0
          %480 = vmatprep.mubr.f32.mxu0 0.0
          %481 = vmatmul.mubr.f32.gmra.mrb[0].mxu0 %v411
          %v482 = vpop.f32.mrb[0].mxu0
          %v483 = vadd.f32 %v402, %v482
          %v484 = vpop.f32.mrb[0].mxu0
          %v485 = vadd.f32 %v406, %v484
          %486 = vmatprep.mubr.f32.mxu0 0.0
          %487 = vmatmul.mubr.f32.gmra.mrb[0].mxu0 %v414
          %v488 = vpop.f32.mrb[0].mxu0
          %v489 = vadd.f32 %v402, %v488
          %v490 = vpop.f32.mrb[0].mxu0
          %v491 = vadd.f32 %v406, %v490
          %492 = vdwg.mxu0
          %v493 = vmax.f32 %v485, 0.0
          %v494 = vmax.f32 %v491, 0.0
          %v495 = vand.u32 2147483647, %v485
          %v496 = vand.u32 2147483647, %v491
          %v497 = vsub.f32 0.0, %v495
          %v498 = vsub.f32 0.0, %v496
          %v499 = vmul.f32 %v497, 1.442695
          %v500 = vpow.pop %v499
          %v501 = vmul.f32 %v498, 1.442695
          %v502 = vpow.pop %v501
          %v503 = vadd.f32 %v500, 1.0
          %v504 = vlog2.pop %v503
          %v505 = vmul.f32 %v504, 0.6931472
          %v506 = vmul.f32 -0.5, %v500
          %v507 = vadd.f32 %v506, 1.0
          %v508 = vmul.f32 %v507, %v500
          %v509 = vand.u32 2147483647, %v500
          %vm510 = vcmp.lt.f32.partialorder %v509, 0.0004427343
          %v511 = vsel %vm510, %v508, %v505
          %v512 = vadd.f32 %v502, 1.0
          %v513 = vlog2.pop %v512
          %v514 = vmul.f32 %v513, 0.6931472
          %v515 = vmul.f32 -0.5, %v502
          %v516 = vadd.f32 %v515, 1.0
          %v517 = vmul.f32 %v516, %v502
          %v518 = vand.u32 2147483647, %v502
          %vm519 = vcmp.lt.f32.partialorder %v518, 0.0004427343
          %v520 = vsel %vm519, %v517, %v514
          %v521 = vadd.f32 %v493, %v511
          %v522 = vadd.f32 %v494, %v520
          %v523 = vmul.f32 %v387, %v521
          %v524 = vmul.f32 %v388, %v522
          %v525 = vadd.f32 %v483, %v523
          %v526 = vadd.f32 %v489, %v524
          %v527 = vlaneseq
          %v528 = vand.u32 %v527, 127
          %vm529 = vcmask 31744
          %v530 = vsel %vm529, %v525, -inf
          %531 = vmax.xlane.f32.xlu0 %v530
          %v532 = vpop.xlane.xlu0 %531
          %v533 = vsel %vm529, %v526, -inf
          %534 = vmax.xlane.f32.xlu0 %v533
          %v535 = vpop.xlane.xlu0 %534
          %vm536 = vcmp.eq.f32.partialorder %v525, %v532
          %vm537 = vcmp.eq.f32.partialorder %v526, %v535
          %v538 = vsel %vm536, %v528, 4
          %v539 = vsel %vm537, %v528, 4
          %v540 = vsel %vm529, %v538, 2147483647
          %v541 = vand.u32 %v540, 65535
          %v542 = vshra.s32 %v540, 16
          %v543 = vcvt.s32.f32 %v541
          %v544 = vcvt.s32.f32 %v542
          %545 = vmin.xlane.f32.xlu0 %v544
          %v546 = vpop.xlane.xlu0 %545
          %vm547 = vcmp.eq.f32.partialorder %v544, %v546
          %v548 = vsel %vm547, %v543, inf
          %549 = vmin.xlane.f32.xlu0 %v548
          %v550 = vpop.xlane.xlu0 %549
          %v551 = vcvt.f32.s32 %v550
          %v552 = vcvt.f32.s32 %v546
          %v553 = vshll.u32 %v552, 16
          %v554 = vadd.s32 %v553, %v551
          %v555 = vsel %vm529, %v539, 2147483647
          %v556 = vand.u32 %v555, 65535
          %v557 = vshra.s32 %v555, 16
          %v558 = vcvt.s32.f32 %v556
          %v559 = vcvt.s32.f32 %v557
          %560 = vmin.xlane.f32.xlu0 %v559
          %v561 = vpop.xlane.xlu0 %560
          %vm562 = vcmp.eq.f32.partialorder %v559, %v561
          %v563 = vsel %vm562, %v558, inf
          %564 = vmin.xlane.f32.xlu0 %v563
          %v565 = vpop.xlane.xlu0 %564
          %v566 = vcvt.f32.s32 %v565
          %v567 = vcvt.f32.s32 %v561
          %v568 = vshll.u32 %v567, 16
          %v569 = vadd.s32 %v568, %v566
          %vm570 = vcmp.eq.s32.totalorder %v528, %v554
          %vm571 = vcmp.eq.s32.totalorder %v528, %v569
          %v572 = vsel %vm570, -inf, %v525
          %v573 = vsel %vm571, -inf, %v526
          %v574 = vsel %vm529, %v572, -inf
          %575 = vmax.xlane.f32.xlu0 %v574
          %v576 = vpop.xlane.xlu0 %575
          %v577 = vsel %vm529, %v573, -inf
          %578 = vmax.xlane.f32.xlu0 %v577
          %v579 = vpop.xlane.xlu0 %578
          %vm580 = vcmp.eq.f32.partialorder %v572, %v576
          %vm581 = vcmp.eq.f32.partialorder %v573, %v579
          %v582 = vsel %vm580, %v528, 4
          %v583 = vsel %vm581, %v528, 4
          %v584 = vsel %vm529, %v582, 2147483647
          %v585 = vand.u32 %v584, 65535
          %v586 = vshra.s32 %v584, 16
          %v587 = vcvt.s32.f32 %v585
          %v588 = vcvt.s32.f32 %v586
          %589 = vmin.xlane.f32.xlu0 %v588
          %v590 = vpop.xlane.xlu0 %589
          %vm591 = vcmp.eq.f32.partialorder %v588, %v590
          %v592 = vsel %vm591, %v587, inf
          %593 = vmin.xlane.f32.xlu0 %v592
          %v594 = vpop.xlane.xlu0 %593
          %v595 = vcvt.f32.s32 %v594
          %v596 = vcvt.f32.s32 %v590
          %v597 = vshll.u32 %v596, 16
          %v598 = vadd.s32 %v597, %v595
          %v599 = vsel %vm529, %v583, 2147483647
          %v600 = vand.u32 %v599, 65535
          %v601 = vshra.s32 %v599, 16
          %v602 = vcvt.s32.f32 %v600
          %v603 = vcvt.s32.f32 %v601
          %604 = vmin.xlane.f32.xlu0 %v603
          %v605 = vpop.xlane.xlu0 %604
          %vm606 = vcmp.eq.f32.partialorder %v603, %v605
          %v607 = vsel %vm606, %v602, inf
          %608 = vmin.xlane.f32.xlu0 %v607
          %v609 = vpop.xlane.xlu0 %608
          %v610 = vcvt.f32.s32 %v609
          %v611 = vcvt.f32.s32 %v605
          %v612 = vshll.u32 %v611, 16
          %v613 = vadd.s32 %v612, %v610
          %vm614 = vcmp.eq.s32.totalorder %v528, %v598
          %vm615 = vcmp.eq.s32.totalorder %v528, %v613
          %vm616 = vmor %vm570, %vm614
          %vm617 = vmor %vm571, %vm615
          %v618 = vsel %vm616, %v525, -inf
          %v619 = vsel %vm617, %v526, -inf
          %v620 = vsel %vm529, %v618, -inf
          %621 = vmax.xlane.f32.xlu0 %v620
          %v622 = vpop.xlane.xlu0 %621
          %v623 = vsel %vm529, %v619, -inf
          %624 = vmax.xlane.f32.xlu0 %v623
          %v625 = vpop.xlane.xlu0 %624
          %v626 = vsub.f32 %v618, %v622
          %v627 = vsub.f32 %v619, %v625
          %v628 = vmul.f32 %v626, 1.442695
          %v629 = vpow.pop %v628
          %v630 = vmul.f32 %v627, 1.442695
          %v631 = vpow.pop %v630
          %v632 = vsel %vm529, %v629, 0.0
          %633 = vadd.xlane.f32.xlu0 %v632
          %v634 = vpop.xlane.xlu0 %633
          %v635 = vsel %vm529, %v631, 0.0
          %636 = vadd.xlane.f32.xlu0 %v635
          %v637 = vpop.xlane.xlu0 %636
          %v638 = vrcp.pop %v634
          %v639 = vrcp.pop %v637
          %v640 = vmul.f32 %v634, %v638
          %v641 = vmul.f32 %v637, %v639
          %v642 = vsub.f32 2.0, %v640
          %v643 = vsub.f32 2.0, %v641
          %v644 = vmul.f32 %v638, %v642
          %v645 = vmul.f32 %v639, %v643
          %v646 = vmul.f32 %v629, %v644
          %v647 = vmul.f32 %v631, %v645
          %648 = vst.msk [vmem:[#allocation2] sm:$0xff] %vm529, %v646
          %649 = vst.msk [vmem:[#allocation2 + $0x8] sm:$0xff] %vm529, %v647
          %650 = vst.msk [vmem:[%s357] sm:$0xff] %vm409, 0.0
          %651 = vst.msk [vmem:[%s357 + $0x8] sm:$0xff] %vm409, 0.0
        $region56: #{tpu_custom_call.1} parent=51 // pred_fallthru
          _
        %v652 = vld [vmem:[%s362] sm:$0xff]
        %v653 = vld [vmem:[%s362 + $0x8] sm:$0xff]
        %v654 = vld [vmem:[%s374] sm:$0xff]
        %v655 = vld [vmem:[%s374 + $0x8] sm:$0xff]
        %v656 = vld [vmem:[%s374 + $0x10] sm:$0xff]
        %v657 = vld [vmem:[%s374 + $0x18] sm:$0xff]
        %s658 = scalar_lea.vmem %s5, %s27
        %v659 = vld [vmem:[%s658] sm:$0x1]
        %v660 = vlaneseq
        %v661 = vshrl.u32 %v660, 7
        %v662 = vsub.s32 0, %v661
        %v663 = vrot.slane %v659, %v662
        %vm664 = vcmask 261120
        %v666 = vsel %vm664, %v652, 0
        %v669 = vsel %vm664, %v653, 0
        %671 = vmatprep.subr.mxu0 0.0
        %672 = vmatpush1.msra.mxu0 %v654
        %673 = vmatprep.subr.mxu0 0.0
        %674 = vmatpush1.msra.mxu0 %v655
        %675 = vmatprep.subr.mxu0 0.0
        %676 = vmatpush1.msra.mxu0 %v656
        %677 = vmatprep.subr.mxu0 0.0
        %678 = vmatpush1.msra.mxu0 %v657
        %679 = vmatprep.subr.mxu0 0.0
        %680 = vmatpush1.msra.mxu0 0.0
        %681 = vmatprep.subr.mxu0 0.0
        %682 = vmatpush1.msra.mxu0 0.0
        %683 = vmatprep.subr.mxu0 0.0
        %684 = vmatpush1.msra.mxu0 0.0
        %685 = vmatprep.subr.mxu0 0.0
        %686 = vmatpush1.msra.mxu0 0.0
        %687 = vmatprep.subr.mxu0 0.0
        %688 = vmatpush1.msra.mxu0 0.0
        %689 = vmatprep.subr.mxu0 0.0
        %690 = vmatpush1.msra.mxu0 0.0
        %691 = vmatprep.subr.mxu0 0.0
        %692 = vmatpush1.msra.mxu0 0.0
        %693 = vmatprep.subr.mxu0 0.0
        %694 = vmatpush1.msra.mxu0 0.0
        %695 = vmatprep.subr.mxu0 0.0
        %696 = vmatpush1.msra.mxu0 0.0
        %697 = vmatprep.subr.mxu0 0.0
        %698 = vmatpush1.msra.mxu0 0.0
        %699 = vmatprep.subr.mxu0 0.0
        %700 = vmatpush1.msra.mxu0 0.0
        %701 = vmatprep.subr.mxu0 0.0
        %702 = vmatpush1.msra.mxu0 0.0
        %703 = vmatprep.subr.mxu0 0.0
        %704 = vmatpush1.msra.mxu0 0.0
        %705 = vmatprep.subr.mxu0 0.0
        %706 = vmatpush1.msra.mxu0 0.0
        %707 = vmatprep.subr.mxu0 0.0
        %708 = vmatpush1.msra.mxu0 0.0
        %709 = vmatprep.subr.mxu0 0.0
        %710 = vmatpush1.msra.mxu0 0.0
        %711 = vmatprep.subr.mxu0 0.0
        %712 = vmatpush1.msra.mxu0 0.0
        %713 = vmatprep.subr.mxu0 0.0
        %714 = vmatpush1.msra.mxu0 0.0
        %715 = vmatprep.subr.mxu0 0.0
        %716 = vmatpush1.msra.mxu0 0.0
        %717 = vmatprep.subr.mxu0 0.0
        %718 = vmatpush1.msra.mxu0 0.0
        %719 = vmatprep.subr.mxu0 0.0
        %720 = vmatpush1.msra.mxu0 0.0
        %721 = vmatprep.subr.mxu0 0.0
        %722 = vmatpush1.msra.mxu0 0.0
        %723 = vmatprep.subr.mxu0 0.0
        %724 = vmatpush1.msra.mxu0 0.0
        %725 = vmatprep.subr.mxu0 0.0
        %726 = vmatpush1.msra.mxu0 0.0
        %727 = vmatprep.subr.mxu0 0.0
        %728 = vmatpush1.msra.mxu0 0.0
        %729 = vmatprep.subr.mxu0 0.0
        %730 = vmatpush1.msra.mxu0 0.0
        %731 = vmatprep.subr.mxu0 0.0
        %732 = vmatpush1.msra.mxu0 0.0
        %733 = vmatprep.subr.mxu0 0.0
        %734 = vmatpush1.msra.mxu0 0.0
        %735 = vmatprep.mubr.f32.mxu0 0.0
        %736 = vmatmul.mubr.f32.gmra.mrb[0].mxu0 %v666
        %v737 = vpop.f32.mrb[0].mxu0
        %v738 = vadd.f32 %v663, %v737
        %v739 = vpop.f32.mrb[0].mxu0
        %740 = vmatprep.mubr.f32.mxu0 0.0
        %741 = vmatmul.mubr.f32.gmra.mrb[0].mxu0 %v669
        %v742 = vpop.f32.mrb[0].mxu0
        %v743 = vadd.f32 %v663, %v742
        %v744 = vpop.f32.mrb[0].mxu0
        %745 = vdwg.mxu0
        %v746 = vmax.f32 %v738, 0.0
        %v747 = vmax.f32 %v743, 0.0
        %v748 = vld [vmem:[%s379] sm:$0xff]
        %v749 = vld [vmem:[%s379 + $0x8] sm:$0xff]
        %v750 = vld [vmem:[%s379 + $0x10] sm:$0xff]
        %v751 = vld [vmem:[%s379 + $0x18] sm:$0xff]
        %v752 = vld [vmem:[%s379 + $0x20] sm:$0xff]
        %v753 = vld [vmem:[%s379 + $0x28] sm:$0xff]
        %v754 = vld [vmem:[%s379 + $0x30] sm:$0xff]
        %v755 = vld [vmem:[%s379 + $0x38] sm:$0xff]
        %v756 = vld [vmem:[%s379 + $0x40] sm:$0xff]
        %v757 = vld [vmem:[%s379 + $0x48] sm:$0xff]
        %v758 = vld [vmem:[%s379 + $0x50] sm:$0xff]
        %v759 = vld [vmem:[%s379 + $0x58] sm:$0xff]
        %v760 = vld [vmem:[%s379 + $0x60] sm:$0xff]
        %v761 = vld [vmem:[%s379 + $0x68] sm:$0xff]
        %v762 = vld [vmem:[%s379 + $0x70] sm:$0xff]
        %v763 = vld [vmem:[%s379 + $0x78] sm:$0xff]
        %s764 = scalar_lea.vmem %s7, %s27
        %v765 = vld [vmem:[%s764] sm:$0x1]
        %v766 = vlaneseq
        %v767 = vshrl.u32 %v766, 7
        %v768 = vsub.s32 0, %v767
        %v769 = vrot.slane %v765, %v768
        %770 = vmatprep.subr.mxu0 0.0
        %771 = vmatpush1.msra.mxu0 %v748
        %772 = vmatprep.subr.mxu0 0.0
        %773 = vmatpush1.msra.mxu0 %v749
        %774 = vmatprep.subr.mxu0 0.0
        %775 = vmatpush1.msra.mxu0 %v750
        %776 = vmatprep.subr.mxu0 0.0
        %777 = vmatpush1.msra.mxu0 %v751
        %778 = vmatprep.subr.mxu0 0.0
        %779 = vmatpush1.msra.mxu0 %v752
        %780 = vmatprep.subr.mxu0 0.0
        %781 = vmatpush1.msra.mxu0 %v753
        %782 = vmatprep.subr.mxu0 0.0
        %783 = vmatpush1.msra.mxu0 %v754
        %784 = vmatprep.subr.mxu0 0.0
        %785 = vmatpush1.msra.mxu0 %v755
        %786 = vmatprep.subr.mxu0 0.0
        %787 = vmatpush1.msra.mxu0 %v756
        %788 = vmatprep.subr.mxu0 0.0
        %789 = vmatpush1.msra.mxu0 %v757
        %790 = vmatprep.subr.mxu0 0.0
        %791 = vmatpush1.msra.mxu0 %v758
        %792 = vmatprep.subr.mxu0 0.0
        %793 = vmatpush1.msra.mxu0 %v759
        %794 = vmatprep.subr.mxu0 0.0
        %795 = vmatpush1.msra.mxu0 %v760
        %796 = vmatprep.subr.mxu0 0.0
        %797 = vmatpush1.msra.mxu0 %v761
        %798 = vmatprep.subr.mxu0 0.0
        %799 = vmatpush1.msra.mxu0 %v762
        %800 = vmatprep.subr.mxu0 0.0
        %801 = vmatpush1.msra.mxu0 %v763
        %802 = vmatprep.subr.mxu0 0.0
        %803 = vmatpush1.msra.mxu0 0.0
        %804 = vmatprep.subr.mxu0 0.0
        %805 = vmatpush1.msra.mxu0 0.0
        %806 = vmatprep.subr.mxu0 0.0
        %807 = vmatpush1.msra.mxu0 0.0
        %808 = vmatprep.subr.mxu0 0.0
        %809 = vmatpush1.msra.mxu0 0.0
        %810 = vmatprep.subr.mxu0 0.0
        %811 = vmatpush1.msra.mxu0 0.0
        %812 = vmatprep.subr.mxu0 0.0
        %813 = vmatpush1.msra.mxu0 0.0
        %814 = vmatprep.subr.mxu0 0.0
        %815 = vmatpush1.msra.mxu0 0.0
        %816 = vmatprep.subr.mxu0 0.0
        %817 = vmatpush1.msra.mxu0 0.0
        %818 = vmatprep.subr.mxu0 0.0
        %819 = vmatpush1.msra.mxu0 0.0
        %820 = vmatprep.subr.mxu0 0.0
        %821 = vmatpush1.msra.mxu0 0.0
        %822 = vmatprep.subr.mxu0 0.0
        %823 = vmatpush1.msra.mxu0 0.0
        %824 = vmatprep.subr.mxu0 0.0
        %825 = vmatpush1.msra.mxu0 0.0
        %826 = vmatprep.subr.mxu0 0.0
        %827 = vmatpush1.msra.mxu0 0.0
        %828 = vmatprep.subr.mxu0 0.0
        %829 = vmatpush1.msra.mxu0 0.0
        %830 = vmatprep.subr.mxu0 0.0
        %831 = vmatpush1.msra.mxu0 0.0
        %832 = vmatprep.subr.mxu0 0.0
        %833 = vmatpush1.msra.mxu0 0.0
        %834 = vmatprep.mubr.f32.mxu0 0.0
        %835 = vmatmul.mubr.f32.gmra.mrb[0].mxu0 %v746
        %v836 = vpop.f32.mrb[0].mxu0
        %v837 = vadd.f32 %v769, %v836
        %v838 = vpop.f32.mrb[0].mxu0
        %839 = vmatprep.mubr.f32.mxu0 0.0
        %840 = vmatmul.mubr.f32.gmra.mrb[0].mxu0 %v747
        %v841 = vpop.f32.mrb[0].mxu0
        %v842 = vadd.f32 %v769, %v841
        %v843 = vpop.f32.mrb[0].mxu0
        %844 = vdwg.mxu0
        %v845 = vld [vmem:[#allocation2] sm:$0xff]
        %v846 = vld [vmem:[#allocation2 + $0x8] sm:$0xff]
        %v847 = vlaneseq
        %v848 = vand.u32 %v847, 127
        %v849 = vstv %s27
        %vm850 = vcmp.eq.s32.totalorder %v848, %v849
        %v851 = vsel %vm850, %v845, 0.0
        %v852 = vsel %vm850, %v846, 0.0
        %vm853 = vcmask 31744
        %v854 = vsel %vm853, %v851, 0.0
        %855 = vadd.xlane.f32.xlu0 %v854
        %v856 = vpop.xlane.xlu0 %855
        %v857 = vsel %vm853, %v852, 0.0
        %858 = vadd.xlane.f32.xlu0 %v857
        %v859 = vpop.xlane.xlu0 %858
        %v860 = vld [vmem:[%s357] sm:$0xff]
        %v861 = vld [vmem:[%s357 + $0x8] sm:$0xff]
        %v862 = vmul.f32 %v856, %v837
        %v863 = vmul.f32 %v859, %v842
        %v864 = vadd.f32 %v860, %v862
        %v865 = vadd.f32 %v861, %v863
        %866 = vst.msk [vmem:[%s357] sm:$0xff] %vm664, %v864
        %867 = vst.msk [vmem:[%s357 + $0x8] sm:$0xff] %vm664, %v865
        %s868 = sand.u32 %s230, 1
        %s869 = scalar_lea.sflag [#allocation4], %s868
        %s870 = sand.u32 %s230, 1
        %s871 = smul.addr %s870, 16
        %s872 = scalar_lea.vmem [#allocation3], %s871
        // Predicated region
        $region57: #{tpu_custom_call.1} parent=51 // pred_check
          %p873 = pneg %p240
        $region58: #{tpu_custom_call.1} parent=51 // pred_check_branch
          %875 = sbr.rel (%p873) target = $region60
        $region59: #{tpu_custom_call.1} parent=51 // pred_region
          %s876 = smul.u32 2, %s26
          %s878 = ssub.s32 256, 256
          %879 = vsyncadd %s869, %s878
          %s880 = smul.addr %s876, 128
          %s881 = scalar_lea.hbm %s8, %s880
          %s882 = sshll.u32 %s872, 4
          %s883 = int_to_ptr.vmem [resolvable:$true] %s882
          %888 = dma.vmem_to_hbm [thread:$0]  %s883, 256, %s881, %s869, 128, 128, 8
        $region60: #{tpu_custom_call.1} parent=51 // pred_fallthru
          _
      $region52: #{tpu_custom_call.1} parent=5 // pred_fallthru
        _
      %p889 = scmp.le.s32.totalorder 2, %s17
      // Predicated region
      $region61: #{tpu_custom_call.1} parent=5 // pred_check
        %p890 = pneg %p889
      $region62: #{tpu_custom_call.1} parent=5 // pred_check_branch
        %892 = sbr.rel (%p890) target = $region64
      $region63: #{tpu_custom_call.1} parent=5 // pred_region
        %s893 = ssub.s32 %s17, 2
        // Predicated region
        $region65: #{tpu_custom_call.1} parent=63 // pred_check
          %p894 = pneg %p246
        $region66: #{tpu_custom_call.1} parent=63 // pred_check_branch
          %896 = sbr.rel (%p894) target = $region68
        $region67: #{tpu_custom_call.1} parent=63 // pred_region
          %s897 = sand.u32 %s231, 1
          %s898 = scalar_lea.sflag [#allocation4], %s897
          %s899 = sand.u32 %s231, 1
          %s900 = smul.addr %s899, 16
          %s901 = scalar_lea.vmem [#allocation3], %s900
          %902 = dma.done %s898, 256
        $region68: #{tpu_custom_call.1} parent=63 // pred_fallthru
          _
      $region64: #{tpu_custom_call.1} parent=5 // pred_fallthru
        _
    $region6: #{tpu_custom_call.1} parent=1 // loop_footer
      %s21 = sadd.s32 1, %s17
    $region7: #{tpu_custom_call.1} parent=1 // loop_footer_branch
      %16 = sbr.rel target = $region3
    $region8: #{tpu_custom_call.1} parent=1 // loop_exit
      _
    %903 = vsyncpa [#allocation4], 1
    %s904 = scalar_lea.sflag [#allocation4], 1
    %905 = vsyncpa %s904, 1

</llo_original>
